<compile_context>
chip_gen: v6e
topology: v6e:2x2x1
jax: 0.10.0
libtpu: 0.0.40
codegen_flags: <defaults>
</compile_context>

<pallas_src>
import functools

import jax
import jax.numpy as jnp
from jax import lax
from jax.experimental import pallas as pl
from jax.experimental.pallas import tpu as pltpu

_LANE = 128


def _round_up(x, m):
    return -(-x // m) * m


def _vmem_capacity_bytes():
    try:
        return int(pltpu.get_tpu_info().vmem_capacity_bytes)
    except Exception:
        return 64 * 1024 * 1024        # conservative fallback (v7x per-TC VMEM)


def _default_reduce_splits():
    """2 on v7x (two TensorCores per chip), else 1.  A reduction split on a
    single-TC chip (v5e/v6e) would just serialize, so keep it off there."""
    try:
        kind = jax.devices()[0].device_kind.lower()
    except Exception:
        return 1
    return 2 if ("v7" in kind or "7x" in kind) else 1


def _pick_tiling(n_rows, m_cols, feat_itemsize, *, mask_on, feat_buffers):
    """Pick the reduction tile width tk (multiple of 128) so that the pipelined
    feature (and mask) buffers plus the resident double-buffered (N, N) f32
    accumulator fit a per-generation VMEM budget.  Returns (tk, vmem_limit)."""
    phys = _vmem_capacity_bytes()
    budget = min(phys // 2, 48 << 20)          # headroom for compiler scratch
    resident = 2 * n_rows * n_rows * 4         # (N, N) f32 out, double-buffered
    per_col = feat_buffers * n_rows * feat_itemsize
    if mask_on:
        per_col += feat_buffers * 8 * 4        # (1, tk) mask row pads to 8 sublanes
    if resident + per_col * _LANE > budget:
        # TODO(synk): tile the (N, N) Gram over row/col blocks for very large N.
        raise NotImplementedError(
            "Gram accumulator {n}x{n} exceeds the VMEM budget ({b} bytes); "
            "output tiling is not implemented.".format(n=n_rows, b=budget))
    cols = (budget - resident) // per_col
    tk = max(_LANE, cols // _LANE * _LANE)
    tk = min(tk, _round_up(m_cols, _LANE))     # never stream more than M (rounded)
    vmem_limit = int(min(phys, max(resident + per_col * tk + (4 << 20), 32 << 20)))
    return tk, vmem_limit


def _gram_kernel(*refs, inv_norm, mask_mode, mxu_dtype, tk, m_total,
                 need_col_mask):
    """One grid step: accumulate G += f_tile @ f_tile.T into the resident
    (N, N) output block; at the last reduction step scale by 1/norm."""
    refs = list(refs)
    feat_ref = refs.pop(0)
    mask_ref = refs.pop(0) if mask_mode is not None else None
    g_ref = refs.pop(0)

    c = pl.program_id(0)                  # reduction-split (TensorCore) index
    k = pl.program_id(1)                  # reduction step within the split

    @pl.when(k == 0)
    def _():
        g_ref[...] = jnp.zeros_like(g_ref)

    f = feat_ref[...]                     # (N, tk), native dtype
    zero = jnp.zeros((), dtype=f.dtype)
    if mask_mode is not None:
        mrow = mask_ref[...]              # (1, tk) raw mask-image row
        keep = (mrow > 0.5) if mask_mode == "gt" else (mrow < 0.5)
        f = jnp.where(keep, f, zero)      # broadcast over the N sublanes (VPU)
    if need_col_mask:
        # Zero columns past the true reduction length: ragged tail block and any
        # clamped duplicate blocks on the last reduction split contribute 0.
        logical_k = c * pl.num_programs(1) + k
        limit = m_total - logical_k * tk
        col = lax.broadcasted_iota(jnp.int32, (1, tk), 1)
        f = jnp.where(col < limit, f, zero)

    fb = f.astype(mxu_dtype)              # bf16 feeds the MXU; f32 accumulation
    g_ref[...] += lax.dot_general(
        fb, fb, dimension_numbers=(((1,), (1,)), ((), ())),
        preferred_element_type=jnp.float32)

    @pl.when(k == pl.num_programs(1) - 1)
    def _():
        g_ref[...] = g_ref[...] * inv_norm


def _gram_pallas(features, norm, *, mask_row=None, mask_mode=None,
                 mxu_dtype=jnp.bfloat16, reduce_splits=None, feat_buffers=2):
    """features: (N, M) streamed at native dtype; optional raw mask row (1, M)
    thresholded in-kernel (mask_mode in {'gt','lt'}).  Returns
    G = (features*mask) @ (features*mask).T / norm as f32 (N, N)."""
    N, M = features.shape
    use_mask = mask_mode is not None
    if reduce_splits is None:
        reduce_splits = _default_reduce_splits()

    tk, vmem_limit = _pick_tiling(N, M, features.dtype.itemsize,
                                  mask_on=use_mask, feat_buffers=feat_buffers)
    nk = pl.cdiv(M, tk)
    splits = max(1, min(int(reduce_splits), nk))
    k_per = pl.cdiv(nk, splits)
    # Any column beyond M (ragged last tile, or duplicate clamped tiles when
    # splits*k_per > nk) must be zeroed in the kernel.
    need_col_mask = (splits * k_per * tk != M)

    if splits == 1:
        def k_index(c, k):
            return k
    else:
        last_blk = nk - 1
        kp = k_per
        def k_index(c, k):
            # clamp so the DMA stays in bounds; duplicates are masked to zero
            return jnp.minimum(c * kp + k, last_blk)

    if feat_buffers == 2:
        feat_spec = pl.BlockSpec((N, tk), lambda c, k: (0, k_index(c, k)))
    else:
        feat_spec = pl.BlockSpec((N, tk), lambda c, k: (0, k_index(c, k)),
                                 pipeline_mode=pl.Buffered(feat_buffers))
    in_specs = [feat_spec]
    inputs = [features]
    if use_mask:
        in_specs.append(pl.BlockSpec((1, tk), lambda c, k: (0, k_index(c, k))))
        inputs.append(mask_row)

    out_shape = jax.ShapeDtypeStruct((splits, N, N), jnp.float32)
    out_specs = pl.BlockSpec((None, N, N), lambda c, k: (c, 0, 0))

    kernel = functools.partial(
        _gram_kernel, inv_norm=1.0 / float(norm), mask_mode=mask_mode,
        mxu_dtype=mxu_dtype, tk=tk, m_total=M, need_col_mask=need_col_mask)

    partials = pl.pallas_call(
        kernel,
        out_shape=out_shape,
        grid_spec=pltpu.PrefetchScalarGridSpec(
            num_scalar_prefetch=0,
            grid=(splits, k_per),
            in_specs=in_specs,
            out_specs=out_specs,
        ),
        compiler_params=pltpu.CompilerParams(
            dimension_semantics=("parallel", "arbitrary"),
            vmem_limit_bytes=vmem_limit),
    )(*inputs)

    if splits == 1:
        return partials[0]
    return jnp.sum(partials, axis=0)     # tiny (N, N) combine of per-core partials


def _flatten_nchw(x):
    b, c, h, w = x.shape
    return x.reshape(b * c, h * w), b * c * h * w


class StyleLossPallas:
    """JAX/Pallas port of the PyTorch StyleLoss module."""

    def __init__(self, target_feature, style, option, mask_type=None,
                 mask_image=None, mxu_dtype=jnp.bfloat16, reduce_splits=None):
        feats, norm = _flatten_nchw(target_feature)
        self.mxu_dtype = mxu_dtype
        self.reduce_splits = reduce_splits
        self.target = _gram_pallas(feats, norm, mxu_dtype=mxu_dtype,
                                   reduce_splits=reduce_splits)
        self.style = style
        self.option = option
        self.mask_type = mask_type
        # TODO(synk): the PyTorch code loads the mask from 'Masks/<mask_type>.bmp';
        # here a deterministic in-memory mask image (H, W) in [0, 1] is injected.
        self.mask_image = mask_image
        self.loss = jnp.float32(0.0)     # F.mse_loss(target, target) == 0

    def forward(self, input_nchw):
        feats, norm = _flatten_nchw(input_nchw)
        if self.option == 'partial_style':
            if self.style == 1:
                mask_mode = 'gt'          # masky:      mask_image > 0.5
            elif self.style == 2:
                mask_mode = 'lt'          # masky_dual: mask_image < 0.5
            else:
                raise RuntimeError(
                    'Incorrect style initialiation: {}'.format(self.style))
            if self.mask_image is None:
                raise RuntimeError('mask_image must be provided in-memory')
            mask_row = jnp.asarray(self.mask_image).reshape(1, -1)
            g = _gram_pallas(feats, norm, mask_row=mask_row, mask_mode=mask_mode,
                             mxu_dtype=self.mxu_dtype,
                             reduce_splits=self.reduce_splits)
        elif self.option == 'dual_style':
            g = _gram_pallas(feats, norm, mxu_dtype=self.mxu_dtype,
                             reduce_splits=self.reduce_splits)
        else:
            raise RuntimeError(
                'Unknown option for style: {}'.format(self.option))
        # MSE against the stored target Gram: tiny (N, N) op, kept outside the
        # kernel so no resident target block competes for VMEM.
        self.loss = jnp.mean(jnp.square(g - self.target))
        return input_nchw

    __call__ = forward


# ---------------- pure-JAX reference for verification ----------------
def _gram_ref(x, mxu_dtype):
    b, c, h, w = x.shape
    f = x.reshape(b * c, h * w).astype(jnp.float32)
    fq = f.astype(mxu_dtype).astype(jnp.float32)   # match the kernel's MXU feed dtype
    g = jnp.dot(fq, fq.T, precision=lax.Precision.HIGHEST)
    return g / (b * c * h * w)


def _mse_ref(a, b):
    return jnp.mean((a - b) ** 2)


def _check_case(target_feature, x, mask_image, *, mxu_dtype=jnp.bfloat16,
                g_rtol=1e-3, g_atol=1e-5, l_rtol=1e-3, l_atol=1e-6):
    ok = True
    gt_ref = _gram_ref(target_feature, mxu_dtype)

    # dual_style
    mod = StyleLossPallas(target_feature, style=0, option='dual_style',
                          mxu_dtype=mxu_dtype)
    out = mod(x)
    jax.block_until_ready(mod.loss)
    ok &= bool(jnp.allclose(mod.target, gt_ref, rtol=g_rtol, atol=g_atol))
    ok &= bool(jnp.allclose(out, x))
    ref_loss = _mse_ref(_gram_ref(x, mxu_dtype), gt_ref)
    ok &= bool(jnp.allclose(mod.loss, ref_loss, rtol=l_rtol, atol=l_atol))

    # partial_style, style 1 (mask > 0.5) and style 2 (mask < 0.5)
    for style in (1, 2):
        mod = StyleLossPallas(target_feature, style=style,
                              option='partial_style', mask_type='synthetic',
                              mask_image=mask_image, mxu_dtype=mxu_dtype)
        out = mod(x)
        jax.block_until_ready(mod.loss)
        m = (mask_image > 0.5) if style == 1 else (mask_image < 0.5)
        x_masked = x * jnp.broadcast_to(m.astype(x.dtype)[None, None], x.shape)
        ref_loss = _mse_ref(_gram_ref(x_masked, mxu_dtype), gt_ref)
        ok &= bool(jnp.allclose(out, x))
        ok &= bool(jnp.allclose(mod.loss, ref_loss, rtol=l_rtol, atol=l_atol))
    return ok


if __name__ == "__main__":
    key = jax.random.PRNGKey(0)
    k1, k2, k3, k4, k5, k6 = jax.random.split(key, 6)

    ok = True

    # case 1: lane-aligned spatial size (H*W = 256)
    B, C, H, W = 2, 4, 16, 16
    target_feature = jax.random.normal(k1, (B, C, H, W), dtype=jnp.float32)
    x = jax.random.normal(k2, (B, C, H, W), dtype=jnp.float32)
    mask_image = jax.random.uniform(k3, (H, W), dtype=jnp.float32)
    ok &= _check_case(target_feature, x, mask_image)

    # case 2: ragged spatial size (H*W = 196) exercising the in-kernel tail mask
    B2, C2, H2, W2 = 1, 8, 14, 14
    target_feature2 = jax.random.normal(k4, (B2, C2, H2, W2), dtype=jnp.float32)
    x2 = jax.random.normal(k5, (B2, C2, H2, W2), dtype=jnp.float32)
    mask_image2 = jax.random.uniform(k6, (H2, W2), dtype=jnp.float32)
    ok &= _check_case(target_feature2, x2, mask_image2)

    if ok:
        print("KERNEL_OK")
    else:
        print("KERNEL_MISMATCH")
</pallas_src>

<mosaic_0001>
module attributes {stable_mosaic.version = 11 : i64} {
  func.func @_gram_kernel(%arg0: i32, %arg1: i32, %arg2: memref<8x256xf32, #tpu.memory_space<vmem>>, %arg3: memref<1x8x8xf32, #tpu.memory_space<vmem>>) attributes {dimension_semantics = [#tpu.dimension_semantics<parallel>, #tpu.dimension_semantics<arbitrary>], iteration_bounds = array<i64: 1, 1>, scalar_prefetch = 0 : i64, scratch_operands = 0 : i64, tpu.core_type = #tpu.core_type<tc>, window_params = [{transform_indices = @transform_0, window_bounds = array<i64: 8, 256>}, {transform_indices = @transform_1, window_bounds = array<i64: 1, 8, 8>}]} {
    %c0_i32 = arith.constant 0 : i32
    %0 = arith.cmpi eq, %arg1, %c0_i32 : i32
    %1 = arith.extui %0 : i1 to i32
    %c0_i32_0 = arith.constant 0 : i32
    %2 = arith.cmpi ne, %1, %c0_i32_0 : i32
    scf.if %2 {
      %cst_10 = arith.constant 0.000000e+00 : f32
      %15 = vector.broadcast %cst_10 : f32 to vector<8x8xf32>
      %c0_11 = arith.constant 0 : index
      %c0_12 = arith.constant 0 : index
      %c0_13 = arith.constant 0 : index
      %16 = vector.load %arg3[%c0_11, %c0_12, %c0_13] : memref<1x8x8xf32, #tpu.memory_space<vmem>>, vector<1x8x8xf32>
      %17 = vector.shape_cast %16 : vector<1x8x8xf32> to vector<8x8xf32>
      %18 = vector.shape_cast %15 : vector<8x8xf32> to vector<1x8x8xf32>
      tpu.vector_store %arg3[%c0_11, %c0_12, %c0_13], %18 {strides = array<i32>} : memref<1x8x8xf32, #tpu.memory_space<vmem>>, vector<1x8x8xf32>,
    } else {
    }
    %c0 = arith.constant 0 : index
    %c0_1 = arith.constant 0 : index
    %3 = vector.load %arg2[%c0, %c0_1] : memref<8x256xf32, #tpu.memory_space<vmem>>, vector<8x256xf32>
    %4 = arith.truncf %3 : vector<8x256xf32> to vector<8x256xbf16>
    %c0_2 = arith.constant 0 : index
    %c0_3 = arith.constant 0 : index
    %c0_4 = arith.constant 0 : index
    %5 = vector.load %arg3[%c0_2, %c0_3, %c0_4] : memref<1x8x8xf32, #tpu.memory_space<vmem>>, vector<1x8x8xf32>
    %6 = vector.shape_cast %5 : vector<1x8x8xf32> to vector<8x8xf32>
    %cst = arith.constant dense<0.000000e+00> : vector<8x8xf32>
    %7 = tpu.matmul %4, %4, %cst {dimension_numbers = #tpu.dot_dimension_numbers<[1], [1], [0], [0], [0, 0, 1, 0], [], []>} : vector<8x256xbf16>, vector<8x256xbf16>, vector<8x8xf32> -> vector<8x8xf32>
    %8 = arith.addf %6, %7 : vector<8x8xf32>
    %c0_5 = arith.constant 0 : index
    %c0_6 = arith.constant 0 : index
    %c0_7 = arith.constant 0 : index
    %9 = vector.load %arg3[%c0_5, %c0_6, %c0_7] : memref<1x8x8xf32, #tpu.memory_space<vmem>>, vector<1x8x8xf32>
    %10 = vector.shape_cast %9 : vector<1x8x8xf32> to vector<8x8xf32>
    %11 = vector.shape_cast %8 : vector<8x8xf32> to vector<1x8x8xf32>
    tpu.vector_store %arg3[%c0_5, %c0_6, %c0_7], %11 {strides = array<i32>} : memref<1x8x8xf32, #tpu.memory_space<vmem>>, vector<1x8x8xf32>,
    %c0_i32_8 = arith.constant 0 : i32
    %12 = arith.cmpi eq, %arg1, %c0_i32_8 : i32
    %13 = arith.extui %12 : i1 to i32
    %c0_i32_9 = arith.constant 0 : i32
    %14 = arith.cmpi ne, %13, %c0_i32_9 : i32
    scf.if %14 {
      %c0_10 = arith.constant 0 : index
      %c0_11 = arith.constant 0 : index
      %c0_12 = arith.constant 0 : index
      %15 = vector.load %arg3[%c0_10, %c0_11, %c0_12] : memref<1x8x8xf32, #tpu.memory_space<vmem>>, vector<1x8x8xf32>
      %16 = vector.shape_cast %15 : vector<1x8x8xf32> to vector<8x8xf32>
      %cst_13 = arith.constant 4.8828125E-4 : f32
      %17 = vector.broadcast %cst_13 : f32 to vector<8x8xf32>
      %18 = arith.mulf %16, %17 : vector<8x8xf32>
      %c0_14 = arith.constant 0 : index
      %c0_15 = arith.constant 0 : index
      %c0_16 = arith.constant 0 : index
      %19 = vector.load %arg3[%c0_14, %c0_15, %c0_16] : memref<1x8x8xf32, #tpu.memory_space<vmem>>, vector<1x8x8xf32>
      %20 = vector.shape_cast %19 : vector<1x8x8xf32> to vector<8x8xf32>
      %21 = vector.shape_cast %18 : vector<8x8xf32> to vector<1x8x8xf32>
      tpu.vector_store %arg3[%c0_14, %c0_15, %c0_16], %21 {strides = array<i32>} : memref<1x8x8xf32, #tpu.memory_space<vmem>>, vector<1x8x8xf32>,
    } else {
    }
    return
  }
  func.func @transform_0(%arg0: i32, %arg1: i32) -> (i32, i32) {
    %c0_i32 = arith.constant 0 : i32
    %c0_i32_0 = arith.constant 0 : i32
    return %c0_i32, %arg1 : i32, i32
  }
  func.func @transform_1(%arg0: i32, %arg1: i32) -> (i32, i32, i32) {
    %c0_i32 = arith.constant 0 : i32
    %c0_i32_0 = arith.constant 0 : i32
    %c0_i32_1 = arith.constant 0 : i32
    return %arg0, %c0_i32, %c0_i32_0 : i32, i32, i32
  }
}

</mosaic_0001>

<llo_original>
// kernel: tpu_custom_call.1
$region0: #{tpu_custom_call.1}
  #allocation0 [shape = 'u32[]', space=smem, size = 0x4, offset = 0x4, fixed_abs, tag = 'smem constant byte address 0x4 - core index']
  #allocation1 [shape = 'u32[144,128]{1,0:T(1,128)}', space=vmem, size = 0x12000, scoped, tag = 'internal scratch']
  %s0 = inlined_call_operand.hbm [shape: f32[8,256], index: 0, kind: input, shape index: {}]
  %s1 = inlined_call_operand.hbm [shape: f32[1,8,8], index: 1, kind: output, shape index: {}]
  %s2 = sld [smem:[#allocation0]]
  $region26: #{tpu_custom_call.1} parent=0
    _
  %s4 = ssub.s32 1, %s2
  %s5 = scalar_select 0, %s4, %s2
  $region1: #{tpu_custom_call.1} parent=0
    #allocation2 [shape = 'u8[8192]{0}', space=vmem, size = 0x2000, scoped, tag = 'input window, operand 0, single buffered']
    #allocation3 [shape = 's32[1]{0}', space=sflag, size = 0x4, scoped, tag = 'scoped memory for tpu_custom_call.1']
    #allocation4 [shape = 's32[1]{0}', space=sflag, size = 0x4, scoped, tag = 'scoped memory for tpu_custom_call.1']
    #allocation5 [shape = 'u8[4096]{0}', space=vmem, size = 0x1000, scoped, tag = 'output window, operand 0, single buffered']
    %6 = vsyncpa [#allocation3], 0
    %7 = vsyncpa [#allocation4], 0
    // Predicated region
    $region2: #{tpu_custom_call.1} parent=1 // pred_check
      _
    $region3: #{tpu_custom_call.1} parent=1 // pred_check_branch
      %9 = sbr.rel (0) target = $region5
    $region4: #{tpu_custom_call.1} parent=1 // pred_region
      %s11 = ssub.s32 256, 256
      %12 = vsyncadd [#allocation3], %s11
      %s14 = sshll.u32 [#allocation2], 4
      %s15 = int_to_ptr.vmem [resolvable:$true] %s14
      %17 = dma.hbm_to_vmem [thread:$0]  %s0, 256, %s15, [#allocation3]
    $region5: #{tpu_custom_call.1} parent=1 // pred_fallthru
      _
    // Predicated region
    $region6: #{tpu_custom_call.1} parent=1 // pred_check
      _
    $region7: #{tpu_custom_call.1} parent=1 // pred_check_branch
      %19 = sbr.rel (0) target = $region9
    $region8: #{tpu_custom_call.1} parent=1 // pred_region
      %20 = dma.done [#allocation3], 256
    $region9: #{tpu_custom_call.1} parent=1 // pred_fallthru
      _
    %p22 = scmp.eq.s32.totalorder 0, 0
    // Predicated region
    $region10: #{tpu_custom_call.1} parent=1 // pred_check
      %p23 = pneg %p22
    $region11: #{tpu_custom_call.1} parent=1 // pred_check_branch
      %25 = sbr.rel (%p23) target = $region13
    $region12: #{tpu_custom_call.1} parent=1 // pred_region
      %vm26 = vcmask 64512
      %27 = vst.msk [vmem:[#allocation5] sm:$0xff] %vm26, 0.0
    $region13: #{tpu_custom_call.1} parent=1 // pred_fallthru
      _
    %v28 = vld [vmem:[#allocation2] sm:$0xff]
    %v29 = vld [vmem:[#allocation2 + $0x8] sm:$0xff]
    %v30 = vpack.c.bf16 %v28, %v28
    %v31 = vpack.c.bf16 %v29, %v29
    %v32 = vld [vmem:[#allocation5] sm:$0xff]
    %33 = vmatprep.subr.bf16.mxu0 0
    %34 = vmatpush1.bf16.xpose.msra.mxu0 0
    %35 = vmatprep.subr.bf16.mxu0 0
    %36 = vmatpush1.bf16.xpose.msra.mxu0 0
    %37 = vmatprep.subr.bf16.mxu0 0
    %38 = vmatpush1.bf16.xpose.msra.mxu0 0
    %39 = vmatprep.subr.bf16.mxu0 0
    %40 = vmatpush1.bf16.xpose.msra.mxu0 0
    %41 = vmatprep.subr.bf16.mxu0 0
    %42 = vmatpush1.bf16.xpose.msra.mxu0 0
    %43 = vmatprep.subr.bf16.mxu0 0
    %44 = vmatpush1.bf16.xpose.msra.mxu0 0
    %45 = vmatprep.subr.bf16.mxu0 0
    %46 = vmatpush1.bf16.xpose.msra.mxu0 0
    %47 = vmatprep.subr.bf16.mxu0 %v31
    %48 = vmatpush1.bf16.xpose.msra.mxu0 %v30
    %49 = vmatprep.subr.bf16.mxu0 0
    %50 = vmatpush2.bf16.xpose.msra.mxu0 0
    %51 = vmatprep.subr.bf16.mxu0 0
    %52 = vmatpush2.bf16.xpose.msra.mxu0 0
    %53 = vmatprep.subr.bf16.mxu0 0
    %54 = vmatpush2.bf16.xpose.msra.mxu0 0
    %55 = vmatprep.subr.bf16.mxu0 0
    %56 = vmatpush2.bf16.xpose.msra.mxu0 0
    %57 = vmatprep.subr.bf16.mxu0 0
    %58 = vmatpush2.bf16.xpose.msra.mxu0 0
    %59 = vmatprep.subr.bf16.mxu0 0
    %60 = vmatpush2.bf16.xpose.msra.mxu0 0
    %61 = vmatprep.subr.bf16.mxu0 0
    %62 = vmatpush2.bf16.xpose.msra.mxu0 0
    %63 = vmatprep.subr.bf16.mxu0 0
    %64 = vmatpush2.bf16.xpose.msra.mxu0 0
    %65 = vmatprep.mubr.bf16.mxu0 %v31
    %66 = vmatmul.mubr.bf16.gmra.mxu0 %v30
    %v67 = vpop.f32.mrf.mxu0
    %v68 = vadd.f32 0.0, %v67
    %v69 = vpop.f32.mrf.mxu0
    %v70 = vpop.f32.mrf.mxu0
    %v71 = vpop.f32.mrf.mxu0
    %72 = vdwg.mxu0
    %v73 = vadd.f32 %v32, %v68
    %vm74 = vcmask 64512
    %75 = vst.msk [vmem:[#allocation5] sm:$0xff] %vm74, %v73
    // Predicated region
    $region14: #{tpu_custom_call.1} parent=1 // pred_check
      %p76 = pneg %p22
    $region15: #{tpu_custom_call.1} parent=1 // pred_check_branch
      %78 = sbr.rel (%p76) target = $region17
    $region16: #{tpu_custom_call.1} parent=1 // pred_region
      %v79 = vld [vmem:[#allocation5] sm:$0xff]
      %v80 = vmul.f32 %v79, 0.00048828125
      %81 = vst.msk [vmem:[#allocation5] sm:$0xff] %vm74, %v80
    $region17: #{tpu_custom_call.1} parent=1 // pred_fallthru
      _
    // Predicated region
    $region18: #{tpu_custom_call.1} parent=1 // pred_check
      _
    $region19: #{tpu_custom_call.1} parent=1 // pred_check_branch
      %83 = sbr.rel (0) target = $region21
    $region20: #{tpu_custom_call.1} parent=1 // pred_region
      %s85 = ssub.s32 128, 128
      %86 = vsyncadd [#allocation4], %s85
      %s88 = sshll.u32 [#allocation5], 4
      %s89 = int_to_ptr.vmem [resolvable:$true] %s88
      %91 = dma.vmem_to_hbm [thread:$0]  %s89, 128, %s1, [#allocation4]
    $region21: #{tpu_custom_call.1} parent=1 // pred_fallthru
      _
    // Predicated region
    $region22: #{tpu_custom_call.1} parent=1 // pred_check
      _
    $region23: #{tpu_custom_call.1} parent=1 // pred_check_branch
      %93 = sbr.rel (0) target = $region25
    $region24: #{tpu_custom_call.1} parent=1 // pred_region
      %94 = dma.done [#allocation4], 128
    $region25: #{tpu_custom_call.1} parent=1 // pred_fallthru
      _
    %95 = vsyncpa [#allocation3], 1
    %96 = vsyncpa [#allocation4], 1

</llo_original>
